<compile_context>
chip_gen: v7x
topology: tpu7x:2x2x1
jax: 0.10.0
libtpu: 0.0.40
codegen_flags: <defaults>
</compile_context>

<pallas_src>
import jax
import jax.numpy as jnp
from jax.experimental import pallas as pl
from jax.experimental.pallas import tpu as pltpu


_LANE = 128


def _round_up(x, m):
    return ((x + m - 1) // m) * m


def _cdiv(a, b):
    return -(-a // b)


def _critic_kernel(obs_ref, act_ref, w1o_ref, w1a_ref, b1_ref, w2_ref, b2_ref, o_ref):
    # obs: [TB, Dobs] f32   act: [TB, Dact] f32
    # w1o: [Dobs, H] bf16   w1a: [Dact, H] bf16   b1: [1, H] f32
    # w2 : [1, H] f32 (pre-transposed row)        b2: [1, 1] f32 in SMEM
    # o  : [1, 1, TB] f32   (lane-dense row of per-example outputs)
    #
    # Layer 1: two bf16 MXU dots (split w1, so the concat never exists in HBM)
    # accumulated in f32.  Kept split rather than fused over K=Dobs+Dact to
    # avoid an unaligned minor-dim concat relayout; bf16 makes the extra padded
    # MXU pass cheap relative to DMA / step overhead.
    h = (
        jnp.dot(obs_ref[...].astype(jnp.bfloat16), w1o_ref[...],
                preferred_element_type=jnp.float32)
        + jnp.dot(act_ref[...].astype(jnp.bfloat16), w1a_ref[...],
                  preferred_element_type=jnp.float32)
        + b1_ref[...]
    )
    h = jnp.maximum(h, 0.0)  # ReLU
    # Layer 2 (H -> 1): elementwise mul + lane reduce (avoids an N=1 MXU matmul).
    out = jnp.sum(h * w2_ref[...], axis=-1) + b2_ref[0, 0]          # [TB]
    # Sublane-column -> lane-dense row relayout (XLU has slack vs the DMA here).
    o_ref[...] = out.reshape(o_ref.shape).astype(o_ref.dtype)


def _vmem_budget_bytes(tb):
    # Two f32 input blocks, lane-padded to 128, double-buffered.
    inputs = 2 * 2 * tb * _LANE * 4
    # bf16 casts + f32 hidden activations + reduce temporaries (generous).
    scratch = 4 * tb * _LANE * 2 + 2 * tb * _LANE * 4
    outputs = 2 * 2 * tb * 4
    total = inputs + scratch + outputs + (8 << 20)
    # Floor at 32 MiB (v5e's default scoped limit is only 16 MiB); cap below
    # v7x's 64 MiB physical per-core VMEM.
    return int(min(max(total, 32 << 20), 60 << 20))


def critic_forward(obs, acts, params, *, tile_b=8192):
    """Pallas equivalent of Critic.forward. obs: [B, dim_obs], acts: [B, dim_act] -> [B, 1]."""
    w1, b1, w2, b2 = params
    B, d_obs = obs.shape
    d_act = acts.shape[-1]
    H = w1.shape[1]

    # Split the first-layer weight so the concat never round-trips through HBM;
    # cast the weights to bf16 once here (activations are cast in-kernel, so the
    # external f32 API and obs/acts HBM traffic are unchanged).
    w1_obs = w1[:d_obs].astype(jnp.bfloat16)
    w1_act = w1[d_obs:].astype(jnp.bfloat16)
    b1_row = b1.reshape(1, H).astype(jnp.float32)
    w2_row = w2.reshape(1, H).astype(jnp.float32)   # pre-transposed, lane-aligned
    b2_s = b2.reshape(1, 1).astype(jnp.float32)

    # Batch tile: multiple of 8 sublanes, at most ceil(B/2) (so both v7x
    # TensorCores get a grid step), at most the 8-rounded batch.
    TB = min(tile_b, _round_up(_cdiv(B, 2), 8), _round_up(B, 8))
    TB = max(8, _round_up(TB, 8))
    # No jnp.pad of the inputs: Pallas masks the ragged last block's DMA; the
    # garbage rows it computes are discarded by the final slice.
    G = _cdiv(B, TB)

    flops = 2 * B * (d_obs + d_act) * H + 4 * B * H
    bytes_accessed = 4 * B * (d_obs + d_act + 1) + 2 * (d_obs + d_act) * H + 4 * (3 * H + 1)

    out = pl.pallas_call(
        _critic_kernel,
        out_shape=jax.ShapeDtypeStruct((G, 1, TB), jnp.float32),
        grid=(G,),
        in_specs=[
            pl.BlockSpec((TB, d_obs), lambda i: (i, 0)),
            pl.BlockSpec((TB, d_act), lambda i: (i, 0)),
            pl.BlockSpec((d_obs, H), lambda i: (0, 0)),
            pl.BlockSpec((d_act, H), lambda i: (0, 0)),
            pl.BlockSpec((1, H), lambda i: (0, 0)),
            pl.BlockSpec((1, H), lambda i: (0, 0)),
            pl.BlockSpec(memory_space=pltpu.MemorySpace.SMEM),
        ],
        out_specs=pl.BlockSpec((1, 1, TB), lambda i: (i, 0, 0)),
        compiler_params=pltpu.CompilerParams(
            dimension_semantics=("parallel",),
            vmem_limit_bytes=_vmem_budget_bytes(TB),
        ),
        cost_estimate=pl.CostEstimate(
            flops=flops, transcendentals=0, bytes_accessed=bytes_accessed
        ),
    )(obs, acts, w1_obs, w1_act, b1_row, w2_row, b2_s)

    # (G, 1, TB) -> (B, 1): tile g, lane t  <->  batch row g*TB + t (row-major).
    return out.reshape(G * TB, 1)[:B]


def init_critic_params(key, dim_observation, dim_action, hidden=32):
    """Deterministic init mirroring torch.nn.Linear default (U[-1/sqrt(fan_in), 1/sqrt(fan_in)])."""
    d_in = dim_observation + dim_action
    k1, k2, k3, k4 = jax.random.split(key, 4)
    bound1 = 1.0 / jnp.sqrt(jnp.float32(d_in))
    bound2 = 1.0 / jnp.sqrt(jnp.float32(hidden))
    w1 = jax.random.uniform(k1, (d_in, hidden), jnp.float32, -bound1, bound1)
    b1 = jax.random.uniform(k2, (1, hidden), jnp.float32, -bound1, bound1)
    w2 = jax.random.uniform(k3, (hidden, 1), jnp.float32, -bound2, bound2)
    b2 = jax.random.uniform(k4, (1, 1), jnp.float32, -bound2, bound2)
    return w1, b1, w2, b2


def critic_reference(obs, acts, params):
    """Pure-JAX f32 reference (matches the PyTorch module exactly)."""
    w1, b1, w2, b2 = params
    x = jnp.concatenate([obs, acts], axis=-1)
    h = jnp.maximum(x @ w1 + b1, 0.0)
    return h @ w2 + b2


def critic_reference_bf16(obs, acts, params):
    """Pure-JAX reference with the same bf16 layer-1 rounding the kernel uses."""
    w1, b1, w2, b2 = params
    d_obs = obs.shape[-1]
    h = (
        jnp.dot(obs.astype(jnp.bfloat16), w1[:d_obs].astype(jnp.bfloat16),
                preferred_element_type=jnp.float32)
        + jnp.dot(acts.astype(jnp.bfloat16), w1[d_obs:].astype(jnp.bfloat16),
                  preferred_element_type=jnp.float32)
        + b1.reshape(1, -1)
    )
    h = jnp.maximum(h, 0.0)
    return jnp.sum(h * w2.reshape(1, -1), axis=-1, keepdims=True) + b2.reshape(1, 1)


if __name__ == "__main__":
    key = jax.random.PRNGKey(0)
    k_params, k_obs, k_act, k_obs2, k_act2 = jax.random.split(key, 5)

    dim_observation = 16
    dim_action = 8
    params = init_critic_params(k_params, dim_observation, dim_action)

    # Small case: single tile (TB = 8, G = 1).
    batch = 8
    obs = jax.random.normal(k_obs, (batch, dim_observation), jnp.float32)
    acts = jax.random.normal(k_act, (batch, dim_action), jnp.float32)
    out = jax.block_until_ready(critic_forward(obs, acts, params))
    assert out.shape == (batch, 1)
    assert jnp.allclose(out, critic_reference_bf16(obs, acts, params),
                        atol=1e-3, rtol=1e-3), "mismatch vs bf16-matched reference (small)"
    assert jnp.allclose(out, critic_reference(obs, acts, params),
                        atol=5e-2, rtol=5e-2), "mismatch vs f32 reference (small)"

    # Ragged multi-tile case with explicit small tile: B=20, tile_b=8 -> TB=8, G=3,
    # last block partially out-of-bounds (masked DMA, no wrapper pad).
    batch2 = 20
    obs2 = jax.random.normal(k_obs2, (batch2, dim_observation), jnp.float32)
    acts2 = jax.random.normal(k_act2, (batch2, dim_action), jnp.float32)
    out2 = jax.block_until_ready(critic_forward(obs2, acts2, params, tile_b=8))
    assert out2.shape == (batch2, 1)
    assert jnp.allclose(out2, critic_reference_bf16(obs2, acts2, params),
                        atol=1e-3, rtol=1e-3), "mismatch vs bf16-matched reference (tiled)"
    assert jnp.allclose(out2, critic_reference(obs2, acts2, params),
                        atol=5e-2, rtol=5e-2), "mismatch vs f32 reference (tiled)"

    # Same ragged batch with default tile selection: TB=16, G=2, exercises the
    # ceil(B/2) cap and the masked boundary block at the default settings.
    out3 = jax.block_until_ready(critic_forward(obs2, acts2, params))
    assert out3.shape == (batch2, 1)
    assert jnp.allclose(out3, critic_reference_bf16(obs2, acts2, params),
                        atol=1e-3, rtol=1e-3), "mismatch vs bf16-matched reference (default tiles)"

    print("KERNEL_OK")
</pallas_src>

<mosaic_0001>
module attributes {stable_mosaic.version = 11 : i64} {
  func.func @_critic_kernel(%arg0: i32, %arg1: memref<8x16xf32, #tpu.memory_space<vmem>>, %arg2: memref<8x8xf32, #tpu.memory_space<vmem>>, %arg3: memref<16x32xbf16, #tpu.memory_space<vmem>>, %arg4: memref<8x32xbf16, #tpu.memory_space<vmem>>, %arg5: memref<1x32xf32, #tpu.memory_space<vmem>>, %arg6: memref<1x32xf32, #tpu.memory_space<vmem>>, %arg7: memref<1x1xf32, #tpu.memory_space<smem>>, %arg8: memref<1x1x8xf32, #tpu.memory_space<vmem>>) attributes {dimension_semantics = [#tpu.dimension_semantics<parallel>], iteration_bounds = array<i64: 1>, scalar_prefetch = 0 : i64, scratch_operands = 0 : i64, tpu.core_type = #tpu.core_type<tc>, window_params = [{transform_indices = @transform_0, window_bounds = array<i64: 8, 16>}, {transform_indices = @transform_1, window_bounds = array<i64: 8, 8>}, {pipeline_mode = #tpu.pipeline_mode<synchronous>, transform_indices = @transform_2, window_bounds = array<i64: 16, 32>}, {pipeline_mode = #tpu.pipeline_mode<synchronous>, transform_indices = @transform_3, window_bounds = array<i64: 8, 32>}, {pipeline_mode = #tpu.pipeline_mode<synchronous>, transform_indices = @transform_4, window_bounds = array<i64: 1, 32>}, {pipeline_mode = #tpu.pipeline_mode<synchronous>, transform_indices = @transform_5, window_bounds = array<i64: 1, 32>}, {transform_indices = @transform_6, window_bounds = array<i64: 1, 1>}, {transform_indices = @transform_7, window_bounds = array<i64: 1, 1, 8>}]} {
    %c0 = arith.constant 0 : index
    %c0_0 = arith.constant 0 : index
    %0 = vector.load %arg1[%c0, %c0_0] : memref<8x16xf32, #tpu.memory_space<vmem>>, vector<8x16xf32>
    %1 = arith.truncf %0 : vector<8x16xf32> to vector<8x16xbf16>
    %c0_1 = arith.constant 0 : index
    %c0_2 = arith.constant 0 : index
    %2 = vector.load %arg3[%c0_1, %c0_2] : memref<16x32xbf16, #tpu.memory_space<vmem>>, vector<16x32xbf16>
    %cst = arith.constant dense<0.000000e+00> : vector<8x32xf32>
    %3 = tpu.matmul %1, %2, %cst {dimension_numbers = #tpu.dot_dimension_numbers<[1], [0], [0], [1], [0, 0, 1, 1], [], []>} : vector<8x16xbf16>, vector<16x32xbf16>, vector<8x32xf32> -> vector<8x32xf32>
    %c0_3 = arith.constant 0 : index
    %c0_4 = arith.constant 0 : index
    %4 = vector.load %arg2[%c0_3, %c0_4] : memref<8x8xf32, #tpu.memory_space<vmem>>, vector<8x8xf32>
    %5 = arith.truncf %4 : vector<8x8xf32> to vector<8x8xbf16>
    %c0_5 = arith.constant 0 : index
    %c0_6 = arith.constant 0 : index
    %6 = vector.load %arg4[%c0_5, %c0_6] : memref<8x32xbf16, #tpu.memory_space<vmem>>, vector<8x32xbf16>
    %cst_7 = arith.constant dense<0.000000e+00> : vector<8x32xf32>
    %7 = tpu.matmul %5, %6, %cst_7 {dimension_numbers = #tpu.dot_dimension_numbers<[1], [0], [0], [1], [0, 0, 1, 1], [], []>} : vector<8x8xbf16>, vector<8x32xbf16>, vector<8x32xf32> -> vector<8x32xf32>
    %8 = arith.addf %3, %7 : vector<8x32xf32>
    %c0_8 = arith.constant 0 : index
    %c0_9 = arith.constant 0 : index
    %9 = vector.load %arg5[%c0_8, %c0_9] : memref<1x32xf32, #tpu.memory_space<vmem>>, vector<1x32xf32>
    %10 = vector.broadcast %9 : vector<1x32xf32> to vector<8x32xf32>
    %11 = arith.addf %8, %10 : vector<8x32xf32>
    %cst_10 = arith.constant 0.000000e+00 : f32
    %12 = vector.broadcast %cst_10 : f32 to vector<8x32xf32>
    %13 = arith.maximumf %11, %12 : vector<8x32xf32>
    %c0_11 = arith.constant 0 : index
    %c0_12 = arith.constant 0 : index
    %14 = vector.load %arg6[%c0_11, %c0_12] : memref<1x32xf32, #tpu.memory_space<vmem>>, vector<1x32xf32>
    %15 = vector.broadcast %14 : vector<1x32xf32> to vector<8x32xf32>
    %16 = arith.mulf %13, %15 : vector<8x32xf32>
    %cst_13 = arith.constant dense<0.000000e+00> : vector<8xf32>
    %17 = vector.multi_reduction <add>, %16, %cst_13 [1] : vector<8x32xf32> to vector<8xf32>
    %c0_14 = arith.constant 0 : index
    %c0_15 = arith.constant 0 : index
    %18 = memref.load %arg7[%c0_14, %c0_15] : memref<1x1xf32, #tpu.memory_space<smem>>
    %19 = vector.broadcast %18 : f32 to vector<8xf32>
    %20 = arith.addf %17, %19 : vector<8xf32>
    %21 = vector.shape_cast %20 : vector<8xf32> to vector<1x1x8xf32>
    %c0_16 = arith.constant 0 : index
    %c0_17 = arith.constant 0 : index
    %c0_18 = arith.constant 0 : index
    %22 = vector.load %arg8[%c0_16, %c0_17, %c0_18] : memref<1x1x8xf32, #tpu.memory_space<vmem>>, vector<1x1x8xf32>
    tpu.vector_store %arg8[%c0_16, %c0_17, %c0_18], %21 {strides = array<i32>} : memref<1x1x8xf32, #tpu.memory_space<vmem>>, vector<1x1x8xf32>,
    return
  }
  func.func @transform_0(%arg0: i32) -> (i32, i32) {
    %c0_i32 = arith.constant 0 : i32
    %c0_i32_0 = arith.constant 0 : i32
    return %arg0, %c0_i32 : i32, i32
  }
  func.func @transform_1(%arg0: i32) -> (i32, i32) {
    %c0_i32 = arith.constant 0 : i32
    %c0_i32_0 = arith.constant 0 : i32
    return %arg0, %c0_i32 : i32, i32
  }
  func.func @transform_2(%arg0: i32) -> (i32, i32) {
    %c0_i32 = arith.constant 0 : i32
    %c0_i32_0 = arith.constant 0 : i32
    %c0_i32_1 = arith.constant 0 : i32
    return %c0_i32, %c0_i32_0 : i32, i32
  }
  func.func @transform_3(%arg0: i32) -> (i32, i32) {
    %c0_i32 = arith.constant 0 : i32
    %c0_i32_0 = arith.constant 0 : i32
    %c0_i32_1 = arith.constant 0 : i32
    return %c0_i32, %c0_i32_0 : i32, i32
  }
  func.func @transform_4(%arg0: i32) -> (i32, i32) {
    %c0_i32 = arith.constant 0 : i32
    %c0_i32_0 = arith.constant 0 : i32
    %c0_i32_1 = arith.constant 0 : i32
    return %c0_i32, %c0_i32_0 : i32, i32
  }
  func.func @transform_5(%arg0: i32) -> (i32, i32) {
    %c0_i32 = arith.constant 0 : i32
    %c0_i32_0 = arith.constant 0 : i32
    %c0_i32_1 = arith.constant 0 : i32
    return %c0_i32, %c0_i32_0 : i32, i32
  }
  func.func @transform_6(%arg0: i32) -> (i32, i32) {
    %c0_i32 = arith.constant 0 : i32
    %c0_i32_0 = arith.constant 0 : i32
    %c0_i32_1 = arith.constant 0 : i32
    return %c0_i32, %c0_i32_0 : i32, i32
  }
  func.func @transform_7(%arg0: i32) -> (i32, i32, i32) {
    %c0_i32 = arith.constant 0 : i32
    %c0_i32_0 = arith.constant 0 : i32
    %c0_i32_1 = arith.constant 0 : i32
    return %arg0, %c0_i32, %c0_i32_0 : i32, i32, i32
  }
}

</mosaic_0001>

<llo_original>
// kernel: tpu_custom_call.1
$region0: #{tpu_custom_call.1}
  #allocation0 [shape = 'u32[]', space=smem, size = 0x4, offset = 0x4, fixed_abs, tag = 'smem constant byte address 0x4 - core index']
  #allocation1 [shape = 'u32[144,128]{1,0:T(1,128)}', space=vmem, size = 0x12000, scoped, tag = 'internal scratch']
  #allocation2 [shape = 'f32[1,1]{1,0:T(1,128)S(6)}', space=smem, size = 0x200, scoped, tag = 'scoped memory for tpu_custom_call.1']
  %s0 = inlined_call_operand.hbm [shape: f32[8,16], index: 0, kind: input, shape index: {}]
  %s1 = inlined_call_operand.hbm [shape: f32[8,8], index: 1, kind: input, shape index: {}]
  %s2 = inlined_call_operand.vmem [shape: bf16[16,32], index: 2, kind: input, shape index: {}]
  %s3 = inlined_call_operand.vmem [shape: bf16[8,32], index: 3, kind: input, shape index: {}]
  %s4 = inlined_call_operand.vmem [shape: f32[1,32], index: 4, kind: input, shape index: {}]
  %s5 = inlined_call_operand.vmem [shape: f32[1,32], index: 5, kind: input, shape index: {}]
  %s6 = inlined_call_operand.<no memory space> [shape: f32[1,1], index: 6, kind: input, shape index: {}]
  %s7 = inlined_call_operand.hbm [shape: f32[1,1,8], index: 7, kind: output, shape index: {}]
  %s8 = sld [smem:[#allocation0]]
  $region46: #{tpu_custom_call.1} parent=0
    _
  %s10 = ssub.s32 1, %s8
  %s11 = scalar_select 0, %s10, %s8
  %12 = sst [smem:[#allocation2]] %s6
  $region1: #{tpu_custom_call.1} parent=0
    #allocation3 [shape = 'u8[4096]{0}', space=vmem, size = 0x1000, scoped, tag = 'input window, operand 0, single buffered']
    #allocation4 [shape = 's32[1]{0}', space=sflag, size = 0x4, scoped, tag = 'scoped memory for tpu_custom_call.1']
    #allocation5 [shape = 's32[1]{0}', space=sflag, size = 0x4, scoped, tag = 'scoped memory for tpu_custom_call.1']
    #allocation6 [shape = 'u8[4096]{0}', space=vmem, size = 0x1000, scoped, tag = 'input window, operand 1, single buffered']
    #allocation7 [shape = 's32[1]{0}', space=sflag, size = 0x4, scoped, tag = 'scoped memory for tpu_custom_call.1']
    #allocation8 [shape = 'u8[512]{0}', space=vmem, size = 0x400, scoped, tag = 'output window, operand 0, single buffered']
    %13 = vsyncpa [#allocation4], 0
    %14 = vsyncpa [#allocation7], 0
    %15 = vsyncpa [#allocation5], 0
    // Predicated region
    $region2: #{tpu_custom_call.1} parent=1 // pred_check
      _
    $region3: #{tpu_custom_call.1} parent=1 // pred_check_branch
      %17 = sbr.rel (0) target = $region5
    $region4: #{tpu_custom_call.1} parent=1 // pred_region
      %s19 = ssub.s32 128, 128
      %20 = vsyncadd [#allocation4], %s19
      %s22 = sshll.u32 [#allocation3], 4
      %s23 = int_to_ptr.vmem [resolvable:$true] %s22
      %25 = dma.hbm_to_vmem [thread:$0]  %s0, 128, %s23, [#allocation4]
    $region5: #{tpu_custom_call.1} parent=1 // pred_fallthru
      _
    // Predicated region
    $region6: #{tpu_custom_call.1} parent=1 // pred_check
      _
    $region7: #{tpu_custom_call.1} parent=1 // pred_check_branch
      %27 = sbr.rel (0) target = $region9
    $region8: #{tpu_custom_call.1} parent=1 // pred_region
      %s29 = ssub.s32 128, 128
      %30 = vsyncadd [#allocation7], %s29
      %s32 = sshll.u32 [#allocation6], 4
      %s33 = int_to_ptr.vmem [resolvable:$true] %s32
      %35 = dma.hbm_to_vmem [thread:$0]  %s1, 128, %s33, [#allocation7]
    $region9: #{tpu_custom_call.1} parent=1 // pred_fallthru
      _
    // Predicated region
    $region10: #{tpu_custom_call.1} parent=1 // pred_check
      _
    $region11: #{tpu_custom_call.1} parent=1 // pred_check_branch
      %37 = sbr.rel (0) target = $region13
    $region12: #{tpu_custom_call.1} parent=1 // pred_region
      _
    $region13: #{tpu_custom_call.1} parent=1 // pred_fallthru
      _
    // Predicated region
    $region14: #{tpu_custom_call.1} parent=1 // pred_check
      _
    $region15: #{tpu_custom_call.1} parent=1 // pred_check_branch
      %39 = sbr.rel (0) target = $region17
    $region16: #{tpu_custom_call.1} parent=1 // pred_region
      _
    $region17: #{tpu_custom_call.1} parent=1 // pred_fallthru
      _
    // Predicated region
    $region18: #{tpu_custom_call.1} parent=1 // pred_check
      _
    $region19: #{tpu_custom_call.1} parent=1 // pred_check_branch
      %41 = sbr.rel (0) target = $region21
    $region20: #{tpu_custom_call.1} parent=1 // pred_region
      _
    $region21: #{tpu_custom_call.1} parent=1 // pred_fallthru
      _
    // Predicated region
    $region22: #{tpu_custom_call.1} parent=1 // pred_check
      _
    $region23: #{tpu_custom_call.1} parent=1 // pred_check_branch
      %43 = sbr.rel (0) target = $region25
    $region24: #{tpu_custom_call.1} parent=1 // pred_region
      _
    $region25: #{tpu_custom_call.1} parent=1 // pred_fallthru
      _
    // Predicated region
    $region26: #{tpu_custom_call.1} parent=1 // pred_check
      _
    $region27: #{tpu_custom_call.1} parent=1 // pred_check_branch
      %45 = sbr.rel (0) target = $region29
    $region28: #{tpu_custom_call.1} parent=1 // pred_region
      _
    $region29: #{tpu_custom_call.1} parent=1 // pred_fallthru
      _
    // Predicated region
    $region30: #{tpu_custom_call.1} parent=1 // pred_check
      _
    $region31: #{tpu_custom_call.1} parent=1 // pred_check_branch
      %47 = sbr.rel (0) target = $region33
    $region32: #{tpu_custom_call.1} parent=1 // pred_region
      %48 = dma.done [#allocation4], 128
    $region33: #{tpu_custom_call.1} parent=1 // pred_fallthru
      _
    // Predicated region
    $region34: #{tpu_custom_call.1} parent=1 // pred_check
      _
    $region35: #{tpu_custom_call.1} parent=1 // pred_check_branch
      %50 = sbr.rel (0) target = $region37
    $region36: #{tpu_custom_call.1} parent=1 // pred_region
      %51 = dma.done [#allocation7], 128
    $region37: #{tpu_custom_call.1} parent=1 // pred_fallthru
      _
    %v53 = vld [vmem:[#allocation3] sm:$0xff]
    %v54 = vpack.c.bf16 %v53, %v53
    %v55 = vld [vmem:[%s2] sm:$0xf]
    %v56 = vld [vmem:[%s2 + $0x4] sm:$0xf]
    %v57 = vld [vmem:[#allocation6] sm:$0xff]
    %v58 = vpack.c.bf16 %v57, %v57
    %v59 = vld [vmem:[%s3] sm:$0xf]
    %vm60 = vcmask 64512
    %v62 = vsel %vm60, %v58, 0
    %vm64 = vcmask 1043456
    %v66 = vsel %vm64, %v59, 0
    %68 = vmatprep.subr.bf16.mxu0 0
    %69 = vmatpush1.bf16.msra.mxu0 %v66
    %70 = vmatprep.subr.bf16.mxu0 0
    %71 = vmatpush1.bf16.msra.mxu0 0
    %72 = vmatprep.subr.bf16.mxu0 0
    %73 = vmatpush1.bf16.msra.mxu0 0
    %74 = vmatprep.subr.bf16.mxu0 0
    %75 = vmatpush1.bf16.msra.mxu0 0
    %76 = vmatprep.subr.bf16.mxu0 0
    %77 = vmatpush1.bf16.msra.mxu0 0
    %78 = vmatprep.subr.bf16.mxu0 0
    %79 = vmatpush1.bf16.msra.mxu0 0
    %80 = vmatprep.subr.bf16.mxu0 0
    %81 = vmatpush1.bf16.msra.mxu0 0
    %82 = vmatprep.subr.bf16.mxu0 0
    %83 = vmatpush1.bf16.msra.mxu0 0
    %84 = vmatprep.subr.bf16.mxu0 0
    %85 = vmatpush1.bf16.msra.mxu0 0
    %86 = vmatprep.subr.bf16.mxu0 0
    %87 = vmatpush1.bf16.msra.mxu0 0
    %88 = vmatprep.subr.bf16.mxu0 0
    %89 = vmatpush1.bf16.msra.mxu0 0
    %90 = vmatprep.subr.bf16.mxu0 0
    %91 = vmatpush1.bf16.msra.mxu0 0
    %92 = vmatprep.subr.bf16.mxu0 0
    %93 = vmatpush1.bf16.msra.mxu0 0
    %94 = vmatprep.subr.bf16.mxu0 0
    %95 = vmatpush1.bf16.msra.mxu0 0
    %96 = vmatprep.subr.bf16.mxu0 0
    %97 = vmatpush1.bf16.msra.mxu0 0
    %98 = vmatprep.subr.bf16.mxu0 0
    %99 = vmatpush1.bf16.msra.mxu0 0
    %100 = vmatprep.mubr.bf16.mxu0 0
    %101 = vmatmul.mubr.bf16.gmra.mrb[0].mxu0 %v62
    %v102 = vpop.f32.mrb[0].mxu0
    %v103 = vadd.f32 0.0, %v102
    %v104 = vpop.f32.mrb[0].mxu0
    %v105 = vpop.f32.mrb[0].mxu0
    %v106 = vpop.f32.mrb[0].mxu0
    %107 = vdwg.mxu0
    %v110 = vunpack.c.l.b16 %v55
    %v111 = vunpack.c.l.b16 %v56
    %v112 = vpack.c.b16 %v111, %v110
    %vm114 = vcmask 130048
    %v116 = vsel %vm114, %v54, 0
    %118 = vmatprep.subr.bf16.mxu0 0
    %119 = vmatpush1.bf16.msra.mxu0 %v112
    %120 = vmatprep.subr.bf16.mxu0 0
    %121 = vmatpush1.bf16.msra.mxu0 0
    %122 = vmatprep.subr.bf16.mxu0 0
    %123 = vmatpush1.bf16.msra.mxu0 0
    %124 = vmatprep.subr.bf16.mxu0 0
    %125 = vmatpush1.bf16.msra.mxu0 0
    %126 = vmatprep.subr.bf16.mxu0 0
    %127 = vmatpush1.bf16.msra.mxu0 0
    %128 = vmatprep.subr.bf16.mxu0 0
    %129 = vmatpush1.bf16.msra.mxu0 0
    %130 = vmatprep.subr.bf16.mxu0 0
    %131 = vmatpush1.bf16.msra.mxu0 0
    %132 = vmatprep.subr.bf16.mxu0 0
    %133 = vmatpush1.bf16.msra.mxu0 0
    %134 = vmatprep.subr.bf16.mxu0 0
    %135 = vmatpush1.bf16.msra.mxu0 0
    %136 = vmatprep.subr.bf16.mxu0 0
    %137 = vmatpush1.bf16.msra.mxu0 0
    %138 = vmatprep.subr.bf16.mxu0 0
    %139 = vmatpush1.bf16.msra.mxu0 0
    %140 = vmatprep.subr.bf16.mxu0 0
    %141 = vmatpush1.bf16.msra.mxu0 0
    %142 = vmatprep.subr.bf16.mxu0 0
    %143 = vmatpush1.bf16.msra.mxu0 0
    %144 = vmatprep.subr.bf16.mxu0 0
    %145 = vmatpush1.bf16.msra.mxu0 0
    %146 = vmatprep.subr.bf16.mxu0 0
    %147 = vmatpush1.bf16.msra.mxu0 0
    %148 = vmatprep.subr.bf16.mxu0 0
    %149 = vmatpush1.bf16.msra.mxu0 0
    %150 = vmatprep.mubr.bf16.mxu0 0
    %151 = vmatmul.mubr.bf16.gmra.mrb[0].mxu0 %v116
    %v152 = vpop.f32.mrb[0].mxu0
    %v153 = vadd.f32 %v103, %v152
    %v154 = vpop.f32.mrb[0].mxu0
    %v155 = vpop.f32.mrb[0].mxu0
    %v156 = vpop.f32.mrb[0].mxu0
    %157 = vdwg.mxu0
    %v158 = vld [vmem:[%s4] sm:$0x1]
    %v160 = vlaneseq
    %v161 = vshrl.u32 %v160, 7
    %v162 = vsub.s32 0, %v161
    %v163 = vrot.slane %v158, %v162
    %v165 = vadd.f32 %v153, %v163
    %v166 = vmax.f32 %v165, 0.0
    %v167 = vld [vmem:[%s5] sm:$0x1]
    %v169 = vlaneseq
    %v170 = vshrl.u32 %v169, 7
    %v171 = vsub.s32 0, %v170
    %v172 = vrot.slane %v167, %v171
    %v174 = vmul.f32 %v166, %v172
    %vm175 = vcmask 261120
    %v176 = vsel %vm175, %v174, 0.0
    %177 = vadd.xlane.f32.xlu0 %v176
    %v178 = vpop.xlane.xlu0 %177
    %s179 = sld [smem:[#allocation2]]
    %v180 = vstv %s179
    %v181 = vadd.f32 %v178, %v180
    %v183 = vlaneseq
    %v184 = vand.u32 %v183, 127
    %v185 = vlaneseq
    %v186 = vshrl.u32 %v185, 7
    %v187 = vsub.s32 %v184, %v186
    %v188 = vrot.slane %v181, %v187
    %vm190 = vcmask 57344
    %191 = vst.msk [vmem:[#allocation8] sm:$0x1] %vm190, %v188
    // Predicated region
    $region38: #{tpu_custom_call.1} parent=1 // pred_check
      _
    $region39: #{tpu_custom_call.1} parent=1 // pred_check_branch
      %193 = sbr.rel (0) target = $region41
    $region40: #{tpu_custom_call.1} parent=1 // pred_region
      %s195 = ssub.s32 16, 16
      %196 = vsyncadd [#allocation5], %s195
      %s198 = sshll.u32 [#allocation8], 4
      %s199 = int_to_ptr.vmem [resolvable:$true] %s198
      %201 = dma.vmem_to_hbm [thread:$0]  %s199, 16, %s7, [#allocation5]
    $region41: #{tpu_custom_call.1} parent=1 // pred_fallthru
      _
    // Predicated region
    $region42: #{tpu_custom_call.1} parent=1 // pred_check
      _
    $region43: #{tpu_custom_call.1} parent=1 // pred_check_branch
      %203 = sbr.rel (0) target = $region45
    $region44: #{tpu_custom_call.1} parent=1 // pred_region
      %204 = dma.done [#allocation5], 16
    $region45: #{tpu_custom_call.1} parent=1 // pred_fallthru
      _
    %205 = vsyncpa [#allocation4], 1
    %206 = vsyncpa [#allocation7], 1
    %207 = vsyncpa [#allocation5], 1

</llo_original>
